<compile_context>
chip_gen: v7x
topology: tpu7x:2x2x1
jax: 0.10.0
libtpu: 0.0.40
codegen_flags: <defaults>
</compile_context>

<pallas_src>
import functools

import jax
import jax.numpy as jnp
from jax.experimental import pallas as pl
from jax.experimental.pallas import tpu as pltpu

_LANE = 128
_NEG_BIG = -9e15                      # same mask value as the PyTorch module
_VMEM_LIMIT = 32 * 1024 * 1024        # safe on v5e/v6e/v7x
_WH_RESIDENT_BYTES = 4 * 1024 * 1024  # resident Wh cap (double-buffered -> 8 MiB)


def _round_up(x, m):
    return (x + m - 1) // m * m


def _pad2d(x, rows, cols):
    r, c = x.shape
    return jnp.pad(x, ((0, rows - r), (0, cols - c)))


def _pick_tile(n, cands):
    for c in cands:
        if n % c == 0:
            return c
    return n


# ----------------------------- Pallas kernels -------------------------------

def _gat_project_kernel(h_ref, w_ref, wh_ref, fs_ref, *, f_pad):
    # h_ref: (TR, F_in_pad)  w_ref: (F_in_pad, F_pad + 128)   [mxu dtype]
    # Single MXU push per tile; fs (attention scores) sliced from f32 acc.
    acc = jnp.dot(h_ref[...], w_ref[...], preferred_element_type=jnp.float32)
    wh_ref[...] = acc[:, :f_pad].astype(wh_ref.dtype)
    fs_ref[...] = acc[:, f_pad:]                    # f32: col 0 = f1, col 1 = f2


def _gat_attention_kernel(f1_ref, f2_ref, adj_ref, wh_ref, o_ref,
                          m_sc, l_sc, acc_sc, *, alpha, concat, tk,
                          wh_resident):
    k = pl.program_id(1)

    @pl.when(k == 0)
    def _init():
        m_sc[...] = jnp.full_like(m_sc, -jnp.inf)
        l_sc[...] = jnp.zeros_like(l_sc)
        acc_sc[...] = jnp.zeros_like(acc_sc)

    off = pl.multiple_of(k * tk, tk)

    # e[i, j] = LeakyReLU(f1[i] + f2[j]), masked where there is no edge (f32).
    f2 = f2_ref[:, pl.ds(off, tk)]                        # (1, TK) VMEM-resident
    e = f1_ref[...] + f2                                  # (TM, TK)
    e = jnp.maximum(e, alpha * e)                         # LeakyReLU, 0 < alpha < 1
    e = jnp.where(adj_ref[...] > 0, e, jnp.float32(_NEG_BIG))

    # Online softmax update (running max / sum live in VMEM scratch).
    m_prev = m_sc[...]
    m_new = jnp.maximum(m_prev, jnp.max(e, axis=1, keepdims=True))
    corr = jnp.exp(m_prev - m_new)
    p = jnp.exp(e - m_new)
    l_sc[...] = corr * l_sc[...] + jnp.sum(p, axis=1, keepdims=True)
    if wh_resident:
        wh = wh_ref[pl.ds(off, tk), :]                    # slice of resident Wh
    else:
        wh = wh_ref[...]                                  # streamed (TK, F_pad) tile
    acc_sc[...] = corr * acc_sc[...] + jnp.dot(
        p.astype(wh.dtype), wh, preferred_element_type=jnp.float32)
    m_sc[...] = m_new

    # TODO(synk): attention dropout is identity here (GATEncoder uses dropout=0).

    @pl.when(k == pl.num_programs(1) - 1)
    def _finalize():
        out = acc_sc[...] * pl.reciprocal(l_sc[...], approx=True)
        if concat:
            # ELU (alpha=1): x if x > 0 else exp(x) - 1
            out = jnp.where(out > 0, out, jnp.exp(jnp.minimum(out, 0.0)) - 1.0)
        o_ref[...] = out.astype(o_ref.dtype)


# ------------------------------ JAX wrappers ---------------------------------

def _gat_layer(h_pad, adj_pad, W, a, *, alpha, concat, mxu_dtype, out_dtype):
    """One GAT layer on padded inputs.

    h_pad  : (N_pad, F_in_pad)  mxu_dtype, zero padded
    adj_pad: (N_pad, N_pad)     int8 0/1 mask, zero padded
    W      : (F_in, F_out) f32  a: (2*F_out, 1) f32   (unpadded parameters)
    returns: (N_pad, F_out_pad) out_dtype
    """
    N_pad, F_in_pad = h_pad.shape
    F_in, F_out = W.shape
    F_pad = _round_up(F_out, _LANE)

    # Augmented weight: [W | W@a1 | W@a2 | 0...] -> one MXU push per row tile.
    Wa = jnp.concatenate([W @ a[:F_out], W @ a[F_out:]], axis=1)   # (F_in, 2) f32
    W_aug = jnp.zeros((F_in_pad, F_pad + _LANE), jnp.float32)
    W_aug = W_aug.at[:F_in, :F_out].set(W)
    W_aug = W_aug.at[:F_in, F_pad:F_pad + 2].set(Wa)
    W_aug = W_aug.astype(mxu_dtype)

    # ---- projection: [Wh | f1 | f2] = h @ W_aug -----------------------------
    TR = _pick_tile(N_pad, (512, 256, 128))
    wh, fs = pl.pallas_call(
        functools.partial(_gat_project_kernel, f_pad=F_pad),
        out_shape=(jax.ShapeDtypeStruct((N_pad, F_pad), mxu_dtype),
                   jax.ShapeDtypeStruct((N_pad, _LANE), jnp.float32)),
        grid=(N_pad // TR,),
        in_specs=[pl.BlockSpec((TR, F_in_pad), lambda i: (i, 0)),
                  pl.BlockSpec((F_in_pad, F_pad + _LANE), lambda i: (0, 0))],
        out_specs=(pl.BlockSpec((TR, F_pad), lambda i: (i, 0)),
                   pl.BlockSpec((TR, _LANE), lambda i: (i, 0))),
        compiler_params=pltpu.CompilerParams(
            dimension_semantics=("parallel",),
            vmem_limit_bytes=_VMEM_LIMIT),
    )(h_pad, W_aug)

    f1 = fs[:, 0:1]                      # (N_pad, 1)   f32
    f2 = fs[:, 1:2].reshape(1, N_pad)    # (1, N_pad)   f32 (column -> row)

    # ---- attention: flash-style tiled masked softmax + aggregation ----------
    TM = 256 if (N_pad % 256 == 0 and N_pad >= 512) else 128   # keep >=2 row tiles
    TK = _pick_tile(N_pad, (1024, 512, 256, 128))
    grid = (N_pad // TM, N_pad // TK)

    isz = jnp.dtype(mxu_dtype).itemsize
    wh_resident = N_pad * F_pad * isz <= _WH_RESIDENT_BYTES
    if wh_resident:
        wh_spec = pl.BlockSpec((N_pad, F_pad), lambda i, k: (0, 0))  # VMEM resident
        wh_bytes = N_pad * F_pad * isz
    else:
        wh_spec = pl.BlockSpec((TK, F_pad), lambda i, k: (k, 0))     # streamed
        wh_bytes = grid[0] * N_pad * F_pad * isz

    cost = pl.CostEstimate(
        flops=2 * N_pad * N_pad * F_pad + 8 * N_pad * N_pad,
        transcendentals=N_pad * N_pad,
        bytes_accessed=(N_pad * N_pad * 1                        # int8 adj mask
                        + wh_bytes
                        + N_pad * F_pad * jnp.dtype(out_dtype).itemsize
                        + 2 * N_pad * 4))

    return pl.pallas_call(
        functools.partial(_gat_attention_kernel, alpha=alpha, concat=concat,
                          tk=TK, wh_resident=wh_resident),
        out_shape=jax.ShapeDtypeStruct((N_pad, F_pad), out_dtype),
        grid=grid,
        in_specs=[pl.BlockSpec((TM, 1), lambda i, k: (i, 0)),        # f1
                  pl.BlockSpec((1, N_pad), lambda i, k: (0, 0)),     # f2 (resident)
                  pl.BlockSpec((TM, TK), lambda i, k: (i, k)),       # adj int8 mask
                  wh_spec],                                          # Wh
        out_specs=pl.BlockSpec((TM, F_pad), lambda i, k: (i, 0)),
        scratch_shapes=[pltpu.VMEM((TM, 1), jnp.float32),            # running max
                        pltpu.VMEM((TM, 1), jnp.float32),            # running sum
                        pltpu.VMEM((TM, F_pad), jnp.float32)],       # accumulator
        compiler_params=pltpu.CompilerParams(
            dimension_semantics=("parallel", "arbitrary"),
            vmem_limit_bytes=_VMEM_LIMIT),
        cost_estimate=cost,
    )(f1, f2, adj_pad, wh)


def gat_encoder(x, adj, params, *, alpha=0.2, mxu_dtype=jnp.bfloat16):
    N, F_in = x.shape
    F_out = params["W2"].shape[1]
    N_pad = _round_up(N, _LANE)
    F_in_pad = _round_up(F_in, _LANE)

    h0 = _pad2d(x, N_pad, F_in_pad).astype(mxu_dtype)
    adj_mask = _pad2d((adj > 0).astype(jnp.int8), N_pad, N_pad)     # int8 0/1

    h1 = _gat_layer(h0, adj_mask, params["W1"], params["a1"], alpha=alpha,
                    concat=True, mxu_dtype=mxu_dtype, out_dtype=mxu_dtype)
    h2 = _gat_layer(h1, adj_mask, params["W2"], params["a2"], alpha=alpha,
                    concat=False, mxu_dtype=mxu_dtype, out_dtype=jnp.float32)
    return h2[:N, :F_out]


# ----------------------- deterministic parameter init ------------------------

def xavier_uniform(key, shape, gain):
    fan_in, fan_out = shape[0], shape[1]
    bound = gain * (6.0 / (fan_in + fan_out)) ** 0.5
    return jax.random.uniform(key, shape, jnp.float32, -bound, bound)


def init_params(key, in_features, hidden_features, out_features, gain=1.414):
    k1, k2, k3, k4 = jax.random.split(key, 4)
    return {
        "W1": xavier_uniform(k1, (in_features, hidden_features), gain),
        "a1": xavier_uniform(k2, (2 * hidden_features, 1), gain),
        "W2": xavier_uniform(k3, (hidden_features, out_features), gain),
        "a2": xavier_uniform(k4, (2 * out_features, 1), gain),
    }


# --------------------------- pure-JAX reference ------------------------------

def _gat_layer_ref(h, adj, W, a, alpha, concat, mxu_dtype):
    F_out = W.shape[1]
    hm = h.astype(mxu_dtype)
    Wh = jnp.dot(hm, W.astype(mxu_dtype), preferred_element_type=jnp.float32)
    if mxu_dtype == jnp.float32:
        # genuine module semantics: f = (h @ W) @ a
        f1 = Wh @ a[:F_out]
        f2 = Wh @ a[F_out:]
    else:
        # precision-matched to the kernel's fused score path: f = h @ (W @ a)
        f1 = jnp.dot(hm, (W @ a[:F_out]).astype(mxu_dtype),
                     preferred_element_type=jnp.float32)
        f2 = jnp.dot(hm, (W @ a[F_out:]).astype(mxu_dtype),
                     preferred_element_type=jnp.float32)
    e = f1 + f2.T
    e = jnp.where(e > 0, e, alpha * e)
    att = jnp.where(adj > 0, e, _NEG_BIG)
    att = jax.nn.softmax(att, axis=1)
    hp = jnp.dot(att.astype(mxu_dtype), Wh.astype(mxu_dtype),
                 preferred_element_type=jnp.float32)
    return jax.nn.elu(hp) if concat else hp


def gat_encoder_ref(x, adj, params, alpha=0.2, mxu_dtype=jnp.float32):
    h1 = _gat_layer_ref(x, adj, params["W1"], params["a1"], alpha, True, mxu_dtype)
    h1 = h1.astype(mxu_dtype).astype(jnp.float32)   # layer-1 activation storage dtype
    return _gat_layer_ref(h1, adj, params["W2"], params["a2"], alpha, False, mxu_dtype)


# --------------------------------- main --------------------------------------

if __name__ == "__main__":
    N = 8              # number of graph nodes
    F_IN = 16
    F_HID = 32
    F_OUT = 16

    key = jax.random.PRNGKey(0)
    kx, kadj, kp = jax.random.split(key, 3)

    x = jax.random.normal(kx, (N, F_IN), jnp.float32)
    # random adjacency with self-loops (float, >0 means edge)
    adj = (jax.random.bernoulli(kadj, 0.5, (N, N)).astype(jnp.float32)
           + jnp.eye(N, dtype=jnp.float32))
    adj = jnp.minimum(adj, 1.0)

    params = init_params(kp, F_IN, F_HID, F_OUT)

    # 1) f32 MXU path: tight algorithmic check against the pure-JAX reference
    #    (genuine module-semantics score path; approx reciprocal ~<= 1e-4 rel).
    out32 = jax.block_until_ready(
        gat_encoder(x, adj, params, mxu_dtype=jnp.float32))
    ref32 = gat_encoder_ref(x, adj, params, mxu_dtype=jnp.float32)
    assert out32.shape == (N, F_OUT)
    assert jnp.allclose(out32, ref32, atol=2e-3, rtol=2e-3), (
        f"f32 path max abs err = {jnp.max(jnp.abs(out32 - ref32))}")

    # 2) bf16-MXU path (default perf config for v6e/v7x): compared against a
    #    precision-matched pure-JAX reference (same bf16 operand cast points).
    out16 = jax.block_until_ready(gat_encoder(x, adj, params))
    ref16 = gat_encoder_ref(x, adj, params, mxu_dtype=jnp.bfloat16)
    assert out16.shape == (N, F_OUT)
    assert jnp.allclose(out16, ref16, atol=5e-2, rtol=5e-2), (
        f"bf16 path max abs err = {jnp.max(jnp.abs(out16 - ref16))}")

    print("KERNEL_OK")
</pallas_src>

<mosaic_0001>
module attributes {stable_mosaic.version = 11 : i64} {
  func.func @_gat_project_kernel(%arg0: i32, %arg1: memref<128x128xf32, #tpu.memory_space<vmem>>, %arg2: memref<128x256xf32, #tpu.memory_space<vmem>>, %arg3: memref<128x128xf32, #tpu.memory_space<vmem>>, %arg4: memref<128x128xf32, #tpu.memory_space<vmem>>) attributes {dimension_semantics = [#tpu.dimension_semantics<parallel>], iteration_bounds = array<i64: 1>, scalar_prefetch = 0 : i64, scratch_operands = 0 : i64, tpu.core_type = #tpu.core_type<tc>, window_params = [{transform_indices = @transform_0, window_bounds = array<i64: 128, 128>}, {pipeline_mode = #tpu.pipeline_mode<synchronous>, transform_indices = @transform_1, window_bounds = array<i64: 128, 256>}, {transform_indices = @transform_2, window_bounds = array<i64: 128, 128>}, {transform_indices = @transform_3, window_bounds = array<i64: 128, 128>}]} {
    %c0 = arith.constant 0 : index
    %c0_0 = arith.constant 0 : index
    %0 = vector.load %arg1[%c0, %c0_0] : memref<128x128xf32, #tpu.memory_space<vmem>>, vector<128x128xf32>
    %c0_1 = arith.constant 0 : index
    %c0_2 = arith.constant 0 : index
    %1 = vector.load %arg2[%c0_1, %c0_2] : memref<128x256xf32, #tpu.memory_space<vmem>>, vector<128x256xf32>
    %cst = arith.constant dense<0.000000e+00> : vector<128x256xf32>
    %2 = tpu.matmul %0, %1, %cst {dimension_numbers = #tpu.dot_dimension_numbers<[1], [0], [0], [1], [0, 0, 1, 1], [], []>} : vector<128x128xf32>, vector<128x256xf32>, vector<128x256xf32> -> vector<128x256xf32>
    %3 = vector.extract_strided_slice %2 {offsets = [0, 0], sizes = [128, 128], strides = [1, 1]} : vector<128x256xf32> to vector<128x128xf32>
    %c0_3 = arith.constant 0 : index
    %c0_4 = arith.constant 0 : index
    %4 = vector.load %arg3[%c0_3, %c0_4] : memref<128x128xf32, #tpu.memory_space<vmem>>, vector<128x128xf32>
    tpu.vector_store %arg3[%c0_3, %c0_4], %3 {strides = array<i32>} : memref<128x128xf32, #tpu.memory_space<vmem>>, vector<128x128xf32>,
    %5 = vector.extract_strided_slice %2 {offsets = [0, 128], sizes = [128, 128], strides = [1, 1]} : vector<128x256xf32> to vector<128x128xf32>
    %c0_5 = arith.constant 0 : index
    %c0_6 = arith.constant 0 : index
    %6 = vector.load %arg4[%c0_5, %c0_6] : memref<128x128xf32, #tpu.memory_space<vmem>>, vector<128x128xf32>
    tpu.vector_store %arg4[%c0_5, %c0_6], %5 {strides = array<i32>} : memref<128x128xf32, #tpu.memory_space<vmem>>, vector<128x128xf32>,
    return
  }
  func.func @transform_0(%arg0: i32) -> (i32, i32) {
    %c0_i32 = arith.constant 0 : i32
    %c0_i32_0 = arith.constant 0 : i32
    return %arg0, %c0_i32 : i32, i32
  }
  func.func @transform_1(%arg0: i32) -> (i32, i32) {
    %c0_i32 = arith.constant 0 : i32
    %c0_i32_0 = arith.constant 0 : i32
    %c0_i32_1 = arith.constant 0 : i32
    return %c0_i32, %c0_i32_0 : i32, i32
  }
  func.func @transform_2(%arg0: i32) -> (i32, i32) {
    %c0_i32 = arith.constant 0 : i32
    %c0_i32_0 = arith.constant 0 : i32
    return %arg0, %c0_i32 : i32, i32
  }
  func.func @transform_3(%arg0: i32) -> (i32, i32) {
    %c0_i32 = arith.constant 0 : i32
    %c0_i32_0 = arith.constant 0 : i32
    return %arg0, %c0_i32 : i32, i32
  }
}

</mosaic_0001>

<llo_original>
// kernel: tpu_custom_call.1
$region0: #{tpu_custom_call.1}
  #allocation0 [shape = 'u32[]', space=smem, size = 0x4, offset = 0x4, fixed_abs, tag = 'smem constant byte address 0x4 - core index']
  #allocation1 [shape = 'u32[144,128]{1,0:T(1,128)}', space=vmem, size = 0x12000, scoped, tag = 'internal scratch']
  %s0 = inlined_call_operand.hbm [shape: f32[128,128], index: 0, kind: input, shape index: {}]
  %s1 = inlined_call_operand.hbm [shape: f32[128,256], index: 1, kind: input, shape index: {}]
  %s2 = inlined_call_operand.hbm [shape: f32[128,128], index: 2, kind: output, shape index: {0}]
  %s3 = inlined_call_operand.hbm [shape: f32[128,128], index: 3, kind: output, shape index: {1}]
  %4 = xla_tuple %s2, %s3
  %s5 = sld [smem:[#allocation0]]
  $region34: #{tpu_custom_call.1} parent=0
    _
  %s7 = ssub.s32 1, %s5
  %s8 = scalar_select 0, %s7, %s5
  $region1: #{tpu_custom_call.1} parent=0
    #allocation2 [shape = 'u8[65536]{0}', space=vmem, size = 0x10000, scoped, tag = 'input window, operand 0, single buffered']
    #allocation3 [shape = 's32[1]{0}', space=sflag, size = 0x4, scoped, tag = 'scoped memory for tpu_custom_call.1']
    #allocation4 [shape = 's32[1]{0}', space=sflag, size = 0x4, scoped, tag = 'scoped memory for tpu_custom_call.1']
    #allocation5 [shape = 'u8[131072]{0}', space=vmem, size = 0x20000, scoped, tag = 'input window, operand 1, single buffered']
    #allocation6 [shape = 's32[1]{0}', space=sflag, size = 0x4, scoped, tag = 'scoped memory for tpu_custom_call.1']
    #allocation7 [shape = 'u8[65536]{0}', space=vmem, size = 0x10000, scoped, tag = 'output window, operand 0, single buffered']
    #allocation8 [shape = 'u8[65536]{0}', space=vmem, size = 0x10000, scoped, tag = 'output window, operand 1, single buffered']
    #allocation9 [shape = 's32[1]{0}', space=sflag, size = 0x4, scoped, tag = 'scoped memory for tpu_custom_call.1']
    %9 = vsyncpa [#allocation3], 0
    %10 = vsyncpa [#allocation6], 0
    %11 = vsyncpa [#allocation4], 0
    %12 = vsyncpa [#allocation9], 0
    // Predicated region
    $region2: #{tpu_custom_call.1} parent=1 // pred_check
      _
    $region3: #{tpu_custom_call.1} parent=1 // pred_check_branch
      %14 = sbr.rel (0) target = $region5
    $region4: #{tpu_custom_call.1} parent=1 // pred_region
      %s16 = ssub.s32 2048, 2048
      %17 = vsyncadd [#allocation3], %s16
      %s18 = sshll.u32 [#allocation2], 4
      %s19 = int_to_ptr.vmem [resolvable:$true] %s18
      %24 = dma.hbm_to_vmem [thread:$0]  %s0, 2048, %s19, [#allocation3], 128, 128, 8
    $region5: #{tpu_custom_call.1} parent=1 // pred_fallthru
      _
    // Predicated region
    $region6: #{tpu_custom_call.1} parent=1 // pred_check
      _
    $region7: #{tpu_custom_call.1} parent=1 // pred_check_branch
      %26 = sbr.rel (0) target = $region9
    $region8: #{tpu_custom_call.1} parent=1 // pred_region
      %s28 = ssub.s32 4096, 4096
      %29 = vsyncadd [#allocation6], %s28
      %s30 = sshll.u32 [#allocation5], 4
      %s31 = int_to_ptr.vmem [resolvable:$true] %s30
      %36 = dma.hbm_to_vmem [thread:$0]  %s1, 4096, %s31, [#allocation6], 256, 256, 16
    $region9: #{tpu_custom_call.1} parent=1 // pred_fallthru
      _
    // Predicated region
    $region10: #{tpu_custom_call.1} parent=1 // pred_check
      _
    $region11: #{tpu_custom_call.1} parent=1 // pred_check_branch
      %38 = sbr.rel (0) target = $region13
    $region12: #{tpu_custom_call.1} parent=1 // pred_region
      %39 = dma.done [#allocation3], 2048
    $region13: #{tpu_custom_call.1} parent=1 // pred_fallthru
      _
    // Predicated region
    $region14: #{tpu_custom_call.1} parent=1 // pred_check
      _
    $region15: #{tpu_custom_call.1} parent=1 // pred_check_branch
      %41 = sbr.rel (0) target = $region17
    $region16: #{tpu_custom_call.1} parent=1 // pred_region
      %42 = dma.done [#allocation6], 4096
    $region17: #{tpu_custom_call.1} parent=1 // pred_fallthru
      _
    %v43 = vld [vmem:[#allocation2] sm:$0xff]
    %v44 = vld [vmem:[#allocation2 + $0x8] sm:$0xff]
    %v45 = vld [vmem:[#allocation2 + $0x10] sm:$0xff]
    %v46 = vld [vmem:[#allocation2 + $0x18] sm:$0xff]
    %v47 = vld [vmem:[#allocation2 + $0x20] sm:$0xff]
    %v48 = vld [vmem:[#allocation2 + $0x28] sm:$0xff]
    %v49 = vld [vmem:[#allocation2 + $0x30] sm:$0xff]
    %v50 = vld [vmem:[#allocation2 + $0x38] sm:$0xff]
    %v51 = vld [vmem:[#allocation2 + $0x40] sm:$0xff]
    %v52 = vld [vmem:[#allocation2 + $0x48] sm:$0xff]
    %v53 = vld [vmem:[#allocation2 + $0x50] sm:$0xff]
    %v54 = vld [vmem:[#allocation2 + $0x58] sm:$0xff]
    %v55 = vld [vmem:[#allocation2 + $0x60] sm:$0xff]
    %v56 = vld [vmem:[#allocation2 + $0x68] sm:$0xff]
    %v57 = vld [vmem:[#allocation2 + $0x70] sm:$0xff]
    %v58 = vld [vmem:[#allocation2 + $0x78] sm:$0xff]
    %v59 = vld [vmem:[#allocation5] sm:$0xff]
    %v60 = vld [vmem:[#allocation5 + $0x8] sm:$0xff]
    %v61 = vld [vmem:[#allocation5 + $0x10] sm:$0xff]
    %v62 = vld [vmem:[#allocation5 + $0x18] sm:$0xff]
    %v63 = vld [vmem:[#allocation5 + $0x20] sm:$0xff]
    %v64 = vld [vmem:[#allocation5 + $0x28] sm:$0xff]
    %v65 = vld [vmem:[#allocation5 + $0x30] sm:$0xff]
    %v66 = vld [vmem:[#allocation5 + $0x38] sm:$0xff]
    %v67 = vld [vmem:[#allocation5 + $0x40] sm:$0xff]
    %v68 = vld [vmem:[#allocation5 + $0x48] sm:$0xff]
    %v69 = vld [vmem:[#allocation5 + $0x50] sm:$0xff]
    %v70 = vld [vmem:[#allocation5 + $0x58] sm:$0xff]
    %v71 = vld [vmem:[#allocation5 + $0x60] sm:$0xff]
    %v72 = vld [vmem:[#allocation5 + $0x68] sm:$0xff]
    %v73 = vld [vmem:[#allocation5 + $0x70] sm:$0xff]
    %v74 = vld [vmem:[#allocation5 + $0x78] sm:$0xff]
    %v75 = vld [vmem:[#allocation5 + $0x80] sm:$0xff]
    %v76 = vld [vmem:[#allocation5 + $0x88] sm:$0xff]
    %v77 = vld [vmem:[#allocation5 + $0x90] sm:$0xff]
    %v78 = vld [vmem:[#allocation5 + $0x98] sm:$0xff]
    %v79 = vld [vmem:[#allocation5 + $0xa0] sm:$0xff]
    %v80 = vld [vmem:[#allocation5 + $0xa8] sm:$0xff]
    %v81 = vld [vmem:[#allocation5 + $0xb0] sm:$0xff]
    %v82 = vld [vmem:[#allocation5 + $0xb8] sm:$0xff]
    %v83 = vld [vmem:[#allocation5 + $0xc0] sm:$0xff]
    %v84 = vld [vmem:[#allocation5 + $0xc8] sm:$0xff]
    %v85 = vld [vmem:[#allocation5 + $0xd0] sm:$0xff]
    %v86 = vld [vmem:[#allocation5 + $0xd8] sm:$0xff]
    %v87 = vld [vmem:[#allocation5 + $0xe0] sm:$0xff]
    %v88 = vld [vmem:[#allocation5 + $0xe8] sm:$0xff]
    %v89 = vld [vmem:[#allocation5 + $0xf0] sm:$0xff]
    %v90 = vld [vmem:[#allocation5 + $0xf8] sm:$0xff]
    %91 = vmatprep.subr.mxu0 %v60
    %92 = vmatpush1.msra.mxu0 %v59
    %93 = vmatprep.subr.mxu0 %v62
    %94 = vmatpush1.msra.mxu0 %v61
    %95 = vmatprep.subr.mxu0 %v64
    %96 = vmatpush1.msra.mxu0 %v63
    %97 = vmatprep.subr.mxu0 %v66
    %98 = vmatpush1.msra.mxu0 %v65
    %99 = vmatprep.subr.mxu0 %v68
    %100 = vmatpush1.msra.mxu0 %v67
    %101 = vmatprep.subr.mxu0 %v70
    %102 = vmatpush1.msra.mxu0 %v69
    %103 = vmatprep.subr.mxu0 %v72
    %104 = vmatpush1.msra.mxu0 %v71
    %105 = vmatprep.subr.mxu0 %v74
    %106 = vmatpush1.msra.mxu0 %v73
    %107 = vmatprep.subr.mxu0 %v76
    %108 = vmatpush1.msra.mxu0 %v75
    %109 = vmatprep.subr.mxu0 %v78
    %110 = vmatpush1.msra.mxu0 %v77
    %111 = vmatprep.subr.mxu0 %v80
    %112 = vmatpush1.msra.mxu0 %v79
    %113 = vmatprep.subr.mxu0 %v82
    %114 = vmatpush1.msra.mxu0 %v81
    %115 = vmatprep.subr.mxu0 %v84
    %116 = vmatpush1.msra.mxu0 %v83
    %117 = vmatprep.subr.mxu0 %v86
    %118 = vmatpush1.msra.mxu0 %v85
    %119 = vmatprep.subr.mxu0 %v88
    %120 = vmatpush1.msra.mxu0 %v87
    %121 = vmatprep.subr.mxu0 %v90
    %122 = vmatpush1.msra.mxu0 %v89
    %123 = vmatprep.subr.mxu0 0.0
    %124 = vmatpush1.msra.mxu0 0.0
    %125 = vmatprep.subr.mxu0 0.0
    %126 = vmatpush1.msra.mxu0 0.0
    %127 = vmatprep.subr.mxu0 0.0
    %128 = vmatpush1.msra.mxu0 0.0
    %129 = vmatprep.subr.mxu0 0.0
    %130 = vmatpush1.msra.mxu0 0.0
    %131 = vmatprep.subr.mxu0 0.0
    %132 = vmatpush1.msra.mxu0 0.0
    %133 = vmatprep.subr.mxu0 0.0
    %134 = vmatpush1.msra.mxu0 0.0
    %135 = vmatprep.subr.mxu0 0.0
    %136 = vmatpush1.msra.mxu0 0.0
    %137 = vmatprep.subr.mxu0 0.0
    %138 = vmatpush1.msra.mxu0 0.0
    %139 = vmatprep.subr.mxu0 0.0
    %140 = vmatpush1.msra.mxu0 0.0
    %141 = vmatprep.subr.mxu0 0.0
    %142 = vmatpush1.msra.mxu0 0.0
    %143 = vmatprep.subr.mxu0 0.0
    %144 = vmatpush1.msra.mxu0 0.0
    %145 = vmatprep.subr.mxu0 0.0
    %146 = vmatpush1.msra.mxu0 0.0
    %147 = vmatprep.subr.mxu0 0.0
    %148 = vmatpush1.msra.mxu0 0.0
    %149 = vmatprep.subr.mxu0 0.0
    %150 = vmatpush1.msra.mxu0 0.0
    %151 = vmatprep.subr.mxu0 0.0
    %152 = vmatpush1.msra.mxu0 0.0
    %153 = vmatprep.subr.mxu0 0.0
    %154 = vmatpush1.msra.mxu0 0.0
    %155 = vmatprep.mubr.f32.mxu0 0.0
    %156 = vmatmul.mubr.f32.gmra.mrb[0].mxu0 %v43
    %v157 = vpop.f32.mrb[0].mxu0
    %v158 = vadd.f32 0.0, %v157
    %v159 = vpop.f32.mrb[0].mxu0
    %v160 = vadd.f32 0.0, %v159
    %161 = vmatprep.mubr.f32.mxu0 0.0
    %162 = vmatmul.mubr.f32.gmra.mrb[0].mxu0 %v44
    %v163 = vpop.f32.mrb[0].mxu0
    %v164 = vadd.f32 0.0, %v163
    %v165 = vpop.f32.mrb[0].mxu0
    %v166 = vadd.f32 0.0, %v165
    %167 = vmatprep.mubr.f32.mxu0 0.0
    %168 = vmatmul.mubr.f32.gmra.mrb[0].mxu0 %v45
    %v169 = vpop.f32.mrb[0].mxu0
    %v170 = vadd.f32 0.0, %v169
    %v171 = vpop.f32.mrb[0].mxu0
    %v172 = vadd.f32 0.0, %v171
    %173 = vmatprep.mubr.f32.mxu0 0.0
    %174 = vmatmul.mubr.f32.gmra.mrb[0].mxu0 %v46
    %v175 = vpop.f32.mrb[0].mxu0
    %v176 = vadd.f32 0.0, %v175
    %v177 = vpop.f32.mrb[0].mxu0
    %v178 = vadd.f32 0.0, %v177
    %179 = vmatprep.mubr.f32.mxu0 0.0
    %180 = vmatmul.mubr.f32.gmra.mrb[0].mxu0 %v47
    %v181 = vpop.f32.mrb[0].mxu0
    %v182 = vadd.f32 0.0, %v181
    %v183 = vpop.f32.mrb[0].mxu0
    %v184 = vadd.f32 0.0, %v183
    %185 = vmatprep.mubr.f32.mxu0 0.0
    %186 = vmatmul.mubr.f32.gmra.mrb[0].mxu0 %v48
    %v187 = vpop.f32.mrb[0].mxu0
    %v188 = vadd.f32 0.0, %v187
    %v189 = vpop.f32.mrb[0].mxu0
    %v190 = vadd.f32 0.0, %v189
    %191 = vmatprep.mubr.f32.mxu0 0.0
    %192 = vmatmul.mubr.f32.gmra.mrb[0].mxu0 %v49
    %v193 = vpop.f32.mrb[0].mxu0
    %v194 = vadd.f32 0.0, %v193
    %v195 = vpop.f32.mrb[0].mxu0
    %v196 = vadd.f32 0.0, %v195
    %197 = vmatprep.mubr.f32.mxu0 0.0
    %198 = vmatmul.mubr.f32.gmra.mrb[0].mxu0 %v50
    %v199 = vpop.f32.mrb[0].mxu0
    %v200 = vadd.f32 0.0, %v199
    %v201 = vpop.f32.mrb[0].mxu0
    %v202 = vadd.f32 0.0, %v201
    %203 = vmatprep.mubr.f32.mxu0 0.0
    %204 = vmatmul.mubr.f32.gmra.mrb[0].mxu0 %v51
    %v205 = vpop.f32.mrb[0].mxu0
    %v206 = vadd.f32 0.0, %v205
    %v207 = vpop.f32.mrb[0].mxu0
    %v208 = vadd.f32 0.0, %v207
    %209 = vmatprep.mubr.f32.mxu0 0.0
    %210 = vmatmul.mubr.f32.gmra.mrb[0].mxu0 %v52
    %v211 = vpop.f32.mrb[0].mxu0
    %v212 = vadd.f32 0.0, %v211
    %v213 = vpop.f32.mrb[0].mxu0
    %v214 = vadd.f32 0.0, %v213
    %215 = vmatprep.mubr.f32.mxu0 0.0
    %216 = vmatmul.mubr.f32.gmra.mrb[0].mxu0 %v53
    %v217 = vpop.f32.mrb[0].mxu0
    %v218 = vadd.f32 0.0, %v217
    %v219 = vpop.f32.mrb[0].mxu0
    %v220 = vadd.f32 0.0, %v219
    %221 = vmatprep.mubr.f32.mxu0 0.0
    %222 = vmatmul.mubr.f32.gmra.mrb[0].mxu0 %v54
    %v223 = vpop.f32.mrb[0].mxu0
    %v224 = vadd.f32 0.0, %v223
    %v225 = vpop.f32.mrb[0].mxu0
    %v226 = vadd.f32 0.0, %v225
    %227 = vmatprep.mubr.f32.mxu0 0.0
    %228 = vmatmul.mubr.f32.gmra.mrb[0].mxu0 %v55
    %v229 = vpop.f32.mrb[0].mxu0
    %v230 = vadd.f32 0.0, %v229
    %v231 = vpop.f32.mrb[0].mxu0
    %v232 = vadd.f32 0.0, %v231
    %233 = vmatprep.mubr.f32.mxu0 0.0
    %234 = vmatmul.mubr.f32.gmra.mrb[0].mxu0 %v56
    %v235 = vpop.f32.mrb[0].mxu0
    %v236 = vadd.f32 0.0, %v235
    %v237 = vpop.f32.mrb[0].mxu0
    %v238 = vadd.f32 0.0, %v237
    %239 = vmatprep.mubr.f32.mxu0 0.0
    %240 = vmatmul.mubr.f32.gmra.mrb[0].mxu0 %v57
    %v241 = vpop.f32.mrb[0].mxu0
    %v242 = vadd.f32 0.0, %v241
    %v243 = vpop.f32.mrb[0].mxu0
    %v244 = vadd.f32 0.0, %v243
    %245 = vmatprep.mubr.f32.mxu0 0.0
    %246 = vmatmul.mubr.f32.gmra.mrb[0].mxu0 %v58
    %v247 = vpop.f32.mrb[0].mxu0
    %v248 = vadd.f32 0.0, %v247
    %v249 = vpop.f32.mrb[0].mxu0
    %v250 = vadd.f32 0.0, %v249
    %251 = vdwg.mxu0
    %252 = vst [vmem:[#allocation7] sm:$0xff] %v158
    %253 = vst [vmem:[#allocation7 + $0x8] sm:$0xff] %v164
    %254 = vst [vmem:[#allocation7 + $0x10] sm:$0xff] %v170
    %255 = vst [vmem:[#allocation7 + $0x18] sm:$0xff] %v176
    %256 = vst [vmem:[#allocation7 + $0x20] sm:$0xff] %v182
    %257 = vst [vmem:[#allocation7 + $0x28] sm:$0xff] %v188
    %258 = vst [vmem:[#allocation7 + $0x30] sm:$0xff] %v194
    %259 = vst [vmem:[#allocation7 + $0x38] sm:$0xff] %v200
    %260 = vst [vmem:[#allocation7 + $0x40] sm:$0xff] %v206
    %261 = vst [vmem:[#allocation7 + $0x48] sm:$0xff] %v212
    %262 = vst [vmem:[#allocation7 + $0x50] sm:$0xff] %v218
    %263 = vst [vmem:[#allocation7 + $0x58] sm:$0xff] %v224
    %264 = vst [vmem:[#allocation7 + $0x60] sm:$0xff] %v230
    %265 = vst [vmem:[#allocation7 + $0x68] sm:$0xff] %v236
    %266 = vst [vmem:[#allocation7 + $0x70] sm:$0xff] %v242
    %267 = vst [vmem:[#allocation7 + $0x78] sm:$0xff] %v248
    %268 = vst [vmem:[#allocation8] sm:$0xff] %v160
    %269 = vst [vmem:[#allocation8 + $0x8] sm:$0xff] %v166
    %270 = vst [vmem:[#allocation8 + $0x10] sm:$0xff] %v172
    %271 = vst [vmem:[#allocation8 + $0x18] sm:$0xff] %v178
    %272 = vst [vmem:[#allocation8 + $0x20] sm:$0xff] %v184
    %273 = vst [vmem:[#allocation8 + $0x28] sm:$0xff] %v190
    %274 = vst [vmem:[#allocation8 + $0x30] sm:$0xff] %v196
    %275 = vst [vmem:[#allocation8 + $0x38] sm:$0xff] %v202
    %276 = vst [vmem:[#allocation8 + $0x40] sm:$0xff] %v208
    %277 = vst [vmem:[#allocation8 + $0x48] sm:$0xff] %v214
    %278 = vst [vmem:[#allocation8 + $0x50] sm:$0xff] %v220
    %279 = vst [vmem:[#allocation8 + $0x58] sm:$0xff] %v226
    %280 = vst [vmem:[#allocation8 + $0x60] sm:$0xff] %v232
    %281 = vst [vmem:[#allocation8 + $0x68] sm:$0xff] %v238
    %282 = vst [vmem:[#allocation8 + $0x70] sm:$0xff] %v244
    %283 = vst [vmem:[#allocation8 + $0x78] sm:$0xff] %v250
    // Predicated region
    $region18: #{tpu_custom_call.1} parent=1 // pred_check
      _
    $region19: #{tpu_custom_call.1} parent=1 // pred_check_branch
      %285 = sbr.rel (0) target = $region21
    $region20: #{tpu_custom_call.1} parent=1 // pred_region
      %s287 = ssub.s32 2048, 2048
      %288 = vsyncadd [#allocation4], %s287
      %s289 = sshll.u32 [#allocation7], 4
      %s290 = int_to_ptr.vmem [resolvable:$true] %s289
      %295 = dma.vmem_to_hbm [thread:$0]  %s290, 2048, %s2, [#allocation4], 128, 128, 8
    $region21: #{tpu_custom_call.1} parent=1 // pred_fallthru
      _
    // Predicated region
    $region22: #{tpu_custom_call.1} parent=1 // pred_check
      _
    $region23: #{tpu_custom_call.1} parent=1 // pred_check_branch
      %297 = sbr.rel (0) target = $region25
    $region24: #{tpu_custom_call.1} parent=1 // pred_region
      %s299 = ssub.s32 2048, 2048
      %300 = vsyncadd [#allocation9], %s299
      %s301 = sshll.u32 [#allocation8], 4
      %s302 = int_to_ptr.vmem [resolvable:$true] %s301
      %307 = dma.vmem_to_hbm [thread:$0]  %s302, 2048, %s3, [#allocation9], 128, 128, 8
    $region25: #{tpu_custom_call.1} parent=1 // pred_fallthru
      _
    // Predicated region
    $region26: #{tpu_custom_call.1} parent=1 // pred_check
      _
    $region27: #{tpu_custom_call.1} parent=1 // pred_check_branch
      %309 = sbr.rel (0) target = $region29
    $region28: #{tpu_custom_call.1} parent=1 // pred_region
      %310 = dma.done [#allocation4], 2048
    $region29: #{tpu_custom_call.1} parent=1 // pred_fallthru
      _
    // Predicated region
    $region30: #{tpu_custom_call.1} parent=1 // pred_check
      _
    $region31: #{tpu_custom_call.1} parent=1 // pred_check_branch
      %312 = sbr.rel (0) target = $region33
    $region32: #{tpu_custom_call.1} parent=1 // pred_region
      %313 = dma.done [#allocation9], 2048
    $region33: #{tpu_custom_call.1} parent=1 // pred_fallthru
      _
    %314 = vsyncpa [#allocation3], 1
    %315 = vsyncpa [#allocation6], 1
    %316 = vsyncpa [#allocation4], 1
    %317 = vsyncpa [#allocation9], 1

</llo_original>
